<compile_context>
chip_gen: v7x
topology: tpu7x:2x2x1
jax: 0.10.0
libtpu: 0.0.40
codegen_flags: <defaults>
</compile_context>

<pallas_src>
import functools

import jax
import jax.numpy as jnp
from jax.experimental import pallas as pl
from jax.experimental.pallas import tpu as pltpu


def _cdiv(a, b):
    return -(-a // b)


def _round_up(a, b):
    return _cdiv(a, b) * b


def _round_down(a, b):
    return (a // b) * b


def _sce_kernel(x_ref, t_ref, w_ref, o_ref,
                acc_ref, m_ref, s_ref, tgt_ref,
                *, n_rows, n_cols, tm, tc, mask_rows, mask_cols):
    """One (tm, tc) logits block: online-logsumexp cross-entropy partial sum.

    Grid = (P groups [parallel], B row blocks [arbitrary], Ck class blocks [arbitrary]).
    """
    p = pl.program_id(0)
    b = pl.program_id(1)
    ck = pl.program_id(2)
    nb_steps = pl.num_programs(1)
    nc_steps = pl.num_programs(2)

    # per-group loss accumulator (vector column -> no per-step scalar reduce)
    @pl.when(jnp.logical_and(b == 0, ck == 0))
    def _():
        acc_ref[...] = jnp.zeros_like(acc_ref)

    # per-row-block running logsumexp state
    @pl.when(ck == 0)
    def _():
        m_ref[...] = jnp.full(m_ref.shape, -jnp.inf, dtype=m_ref.dtype)
        s_ref[...] = jnp.zeros_like(s_ref)
        tgt_ref[...] = jnp.zeros_like(tgt_ref)

    x = x_ref[...].astype(jnp.float32)                       # (tm, tc) logits
    t = t_ref[...]                                            # (tm, 1)  int32 targets

    # global class index of every lane in this block
    col = ck * tc + jax.lax.broadcasted_iota(jnp.int32, x.shape, 1)
    if mask_cols:                                             # ragged last class block
        x = jnp.where(col < n_cols, x, -jnp.inf)

    # one-hot gather of the target logit (partial contribution of this class block)
    tgt_ref[...] += jnp.sum(jnp.where(col == t, x, 0.0), axis=1, keepdims=True)

    # online (running) logsumexp update
    # NOTE: lane reductions stay on the XLU; if profiling ever shows the XLU as the
    # saturating slot (v6e/v7x), the two sums could be moved onto the idle MXU.
    m_old = m_ref[...]
    m_new = jnp.maximum(m_old, jnp.max(x, axis=1, keepdims=True))
    s_ref[...] = (s_ref[...] * jnp.exp(m_old - m_new)
                  + jnp.sum(jnp.exp(x - m_new), axis=1, keepdims=True))
    m_ref[...] = m_new

    # finalize this row block once all class blocks have been folded in
    @pl.when(ck == nc_steps - 1)
    def _():
        lse = m_ref[...] + jnp.log(s_ref[...])
        raw = lse - tgt_ref[...]
        w = w_ref[...]
        if mask_rows:
            row0 = (p * nb_steps + b) * tm
            rows = row0 + jax.lax.broadcasted_iota(jnp.int32, raw.shape, 0)
            loss = jnp.where(rows < n_rows, raw * w, 0.0)
        else:
            loss = raw * w
        acc_ref[...] += loss

    # single cross-sublane reduce + lane-dense write-out per group
    @pl.when(jnp.logical_and(b == nb_steps - 1, ck == nc_steps - 1))
    def _():
        total = jnp.sum(acc_ref[...]).reshape(1, 1, 1)
        o_ref[...] = jnp.broadcast_to(total, o_ref.shape)


# per-row VMEM cost of the (tm,1) target/weight blocks (padded to 128 lanes, double
# buffered) plus the four (tm,1) f32 scratch columns: 2*2*512 + 4*512 = 4096 bytes/row
_ROW_SIDE_BYTES = 4096
# target for (double-buffered logits blocks + target/weight blocks + scratch)
_PIPELINE_BUDGET = 16 * 1024 * 1024


def soft_cross_entropy_loss(inputs, targets, weights=None,
                            *, _pipeline_budget_bytes=_PIPELINE_BUDGET):
    """Pallas-TPU equivalent of SoftCrossEntropyLoss.forward(inputs, targets, weights)."""
    N, C = inputs.shape

    # stream logits at native precision (bf16 halves HBM bytes); anything else -> f32
    if inputs.dtype not in (jnp.dtype(jnp.bfloat16), jnp.dtype(jnp.float32)):
        inputs = inputs.astype(jnp.float32)
    db = inputs.dtype.itemsize
    row_align = {4: 8, 2: 16, 1: 32}[db]

    # ---- tiling -----------------------------------------------------------
    budget = max(int(_pipeline_budget_bytes),
                 row_align * (2 * 128 * db + _ROW_SIDE_BYTES))
    per_row_full = 2 * C * db + _ROW_SIDE_BYTES       # logits dbl-buf + t/w/scratch, per row
    if row_align * per_row_full <= budget:
        # common case: full class dim in one block, as many rows as the budget allows
        tc = C
        tm_cap = _round_down(N, row_align) if N >= row_align else row_align
        tm = max(row_align, min(_round_down(budget // per_row_full, row_align), tm_cap))
    else:
        # vocab-scale C: minimal row tile, grid-tile classes (online logsumexp)
        tm = row_align
        tc = _round_down((budget - tm * _ROW_SIDE_BYTES) // (2 * tm * db), 128)
        tc = max(128, min(tc, _round_up(C, 128)))
    nck = _cdiv(C, tc)                                 # class blocks
    nb = _cdiv(N, tm)                                  # row blocks

    # one partial-sum group per TensorCore: 2 on v7x-style megacore, else 1
    num_cores = 1
    try:
        if "v7" in jax.devices()[0].device_kind.lower():
            num_cores = 2
    except Exception:
        pass
    P = num_cores if nb >= num_cores else 1
    B = _cdiv(nb, P)

    mask_rows = (P * B * tm != N)                      # ragged / padded row blocks exist
    mask_cols = (nck * tc != C)                        # ragged last class block exists

    t2d = targets.astype(jnp.int32).reshape(N, 1)
    w2d = (jnp.ones((N, 1), jnp.float32) if weights is None
           else weights.astype(jnp.float32).reshape(N, 1))

    kernel = functools.partial(
        _sce_kernel, n_rows=N, n_cols=C, tm=tm, tc=tc,
        mask_rows=mask_rows, mask_cols=mask_cols)

    # scoped-VMEM budget: pipeline buffers + headroom for block-sized temporaries.
    # (explicit limit matters on v5e whose scoped default is 16 MiB; capped at 48 MiB
    #  so we stay well inside v7x's 64 MiB physical VMEM)
    est_vmem = 2 * tm * tc * db + tm * _ROW_SIDE_BYTES + (1 << 20)
    vmem_limit = int(min(48 << 20, max(32 << 20, est_vmem + (24 << 20))))

    partials = pl.pallas_call(
        kernel,
        out_shape=jax.ShapeDtypeStruct((P, 8, 128), jnp.float32),
        grid_spec=pltpu.PrefetchScalarGridSpec(
            num_scalar_prefetch=0,
            grid=(P, B, nck),
            in_specs=[
                pl.BlockSpec((tm, tc), lambda p, b, ck: (p * B + b, ck)),   # logits
                pl.BlockSpec((tm, 1), lambda p, b, ck: (p * B + b, 0)),     # targets
                pl.BlockSpec((tm, 1), lambda p, b, ck: (p * B + b, 0)),     # weights
            ],
            out_specs=pl.BlockSpec((1, 8, 128), lambda p, b, ck: (p, 0, 0)),
            scratch_shapes=[pltpu.VMEM((tm, 1), jnp.float32)] * 4,          # acc, m, s, tgt
        ),
        compiler_params=pltpu.CompilerParams(
            dimension_semantics=("parallel", "arbitrary", "arbitrary"),
            vmem_limit_bytes=vmem_limit,
        ),
    )(inputs, t2d, w2d)

    # sum of per-group partial sums, divided by the *true* N (torch .mean() semantics
    # for both the weighted and unweighted branch)
    return jnp.sum(partials[:, 0, 0]) / N


# TODO(synk): update_clusters() only stores an attribute (no computation) — not a kernel.


if __name__ == "__main__":
    key = jax.random.PRNGKey(0)
    k_x, k_t, k_w, k_x2, k_t2, k_w2 = jax.random.split(key, 6)

    def _ref(inputs, targets, weights=None):
        logp = jax.nn.log_softmax(inputs.astype(jnp.float32), axis=-1)
        per_row = -jnp.take_along_axis(logp, targets[:, None].astype(jnp.int32), axis=1)[:, 0]
        if weights is None:
            return per_row.mean()
        return (per_row * weights.astype(jnp.float32)).mean()

    # 1) small classification batch (single-block fast path)
    N, C = 8, 10
    inputs = jax.random.normal(k_x, (N, C), jnp.float32)
    targets = jax.random.randint(k_t, (N,), 0, C, dtype=jnp.int32)
    weights = jax.random.uniform(k_w, (N,), jnp.float32)

    loss_plain = soft_cross_entropy_loss(inputs, targets)
    loss_weighted = soft_cross_entropy_loss(inputs, targets, weights)
    jax.block_until_ready((loss_plain, loss_weighted))
    assert jnp.allclose(loss_plain, _ref(inputs, targets), atol=1e-5, rtol=1e-5)
    assert jnp.allclose(loss_weighted, _ref(inputs, targets, weights), atol=1e-5, rtol=1e-5)

    # 2) larger ragged batch (multi row-block accumulation + ragged-row masking)
    N2, C2 = 2003, 700
    inputs2 = jax.random.normal(k_x2, (N2, C2), jnp.float32)
    targets2 = jax.random.randint(k_t2, (N2,), 0, C2, dtype=jnp.int32)
    weights2 = jax.random.uniform(k_w2, (N2,), jnp.float32)

    l2p = soft_cross_entropy_loss(inputs2, targets2)
    l2w = soft_cross_entropy_loss(inputs2, targets2, weights2)
    jax.block_until_ready((l2p, l2w))
    assert jnp.allclose(l2p, _ref(inputs2, targets2), atol=1e-4, rtol=1e-4)
    assert jnp.allclose(l2w, _ref(inputs2, targets2, weights2), atol=1e-4, rtol=1e-4)

    # 3) bf16 logits streamed at native precision (halved HBM traffic path)
    inputs2_bf = inputs2.astype(jnp.bfloat16)
    l3 = soft_cross_entropy_loss(inputs2_bf, targets2, weights2)
    jax.block_until_ready(l3)
    assert jnp.allclose(l3, _ref(inputs2_bf, targets2, weights2), atol=1e-3, rtol=1e-3)

    # 4) force the class-tiled online-logsumexp path (vocab-scale-C code path)
    l4 = soft_cross_entropy_loss(inputs2, targets2, weights2,
                                 _pipeline_budget_bytes=64 * 1024)
    jax.block_until_ready(l4)
    assert jnp.allclose(l4, _ref(inputs2, targets2, weights2), atol=1e-4, rtol=1e-4)

    print("KERNEL_OK")
</pallas_src>

<mosaic_0001>
module attributes {stable_mosaic.version = 11 : i64} {
  func.func @_sce_kernel(%arg0: i32, %arg1: i32, %arg2: i32, %arg3: memref<8x10xf32, #tpu.memory_space<vmem>>, %arg4: memref<8x1xi32, #tpu.memory_space<vmem>>, %arg5: memref<8x1xf32, #tpu.memory_space<vmem>>, %arg6: memref<1x8x128xf32, #tpu.memory_space<vmem>>, %arg7: memref<8x1xf32, #tpu.memory_space<vmem>>, %arg8: memref<8x1xf32, #tpu.memory_space<vmem>>, %arg9: memref<8x1xf32, #tpu.memory_space<vmem>>, %arg10: memref<8x1xf32, #tpu.memory_space<vmem>>) attributes {dimension_semantics = [#tpu.dimension_semantics<parallel>, #tpu.dimension_semantics<arbitrary>, #tpu.dimension_semantics<arbitrary>], iteration_bounds = array<i64: 1, 1, 1>, scalar_prefetch = 0 : i64, scratch_operands = 4 : i64, tpu.core_type = #tpu.core_type<tc>, window_params = [{transform_indices = @transform_0, window_bounds = array<i64: 8, 10>}, {transform_indices = @transform_1, window_bounds = array<i64: 8, 1>}, {transform_indices = @transform_2, window_bounds = array<i64: 8, 1>}, {transform_indices = @transform_3, window_bounds = array<i64: 1, 8, 128>}]} {
    %c0_i32 = arith.constant 0 : i32
    %0 = arith.cmpi eq, %arg1, %c0_i32 : i32
    %c0_i32_0 = arith.constant 0 : i32
    %1 = arith.cmpi eq, %arg2, %c0_i32_0 : i32
    %2 = arith.andi %0, %1 : i1
    %3 = arith.extui %2 : i1 to i32
    %c0_i32_1 = arith.constant 0 : i32
    %4 = arith.cmpi ne, %3, %c0_i32_1 : i32
    scf.if %4 {
      %cst_27 = arith.constant 0.000000e+00 : f32
      %47 = vector.broadcast %cst_27 : f32 to vector<8x1xf32>
      %c0_28 = arith.constant 0 : index
      %c0_29 = arith.constant 0 : index
      %48 = vector.load %arg7[%c0_28, %c0_29] : memref<8x1xf32, #tpu.memory_space<vmem>>, vector<8x1xf32>
      tpu.vector_store %arg7[%c0_28, %c0_29], %47 {strides = array<i32>} : memref<8x1xf32, #tpu.memory_space<vmem>>, vector<8x1xf32>,
    } else {
    }
    %c0_i32_2 = arith.constant 0 : i32
    %5 = arith.cmpi eq, %arg2, %c0_i32_2 : i32
    %6 = arith.extui %5 : i1 to i32
    %c0_i32_3 = arith.constant 0 : i32
    %7 = arith.cmpi ne, %6, %c0_i32_3 : i32
    scf.if %7 {
      %cst_27 = arith.constant 0xFF800000 : f32
      %47 = vector.broadcast %cst_27 : f32 to vector<8x1xf32>
      %c0_28 = arith.constant 0 : index
      %c0_29 = arith.constant 0 : index
      %48 = vector.load %arg8[%c0_28, %c0_29] : memref<8x1xf32, #tpu.memory_space<vmem>>, vector<8x1xf32>
      tpu.vector_store %arg8[%c0_28, %c0_29], %47 {strides = array<i32>} : memref<8x1xf32, #tpu.memory_space<vmem>>, vector<8x1xf32>,
      %cst_30 = arith.constant 0.000000e+00 : f32
      %49 = vector.broadcast %cst_30 : f32 to vector<8x1xf32>
      %c0_31 = arith.constant 0 : index
      %c0_32 = arith.constant 0 : index
      %50 = vector.load %arg9[%c0_31, %c0_32] : memref<8x1xf32, #tpu.memory_space<vmem>>, vector<8x1xf32>
      tpu.vector_store %arg9[%c0_31, %c0_32], %49 {strides = array<i32>} : memref<8x1xf32, #tpu.memory_space<vmem>>, vector<8x1xf32>,
      %cst_33 = arith.constant 0.000000e+00 : f32
      %51 = vector.broadcast %cst_33 : f32 to vector<8x1xf32>
      %c0_34 = arith.constant 0 : index
      %c0_35 = arith.constant 0 : index
      %52 = vector.load %arg10[%c0_34, %c0_35] : memref<8x1xf32, #tpu.memory_space<vmem>>, vector<8x1xf32>
      tpu.vector_store %arg10[%c0_34, %c0_35], %51 {strides = array<i32>} : memref<8x1xf32, #tpu.memory_space<vmem>>, vector<8x1xf32>,
    } else {
    }
    %c0 = arith.constant 0 : index
    %c0_4 = arith.constant 0 : index
    %8 = vector.load %arg3[%c0, %c0_4] : memref<8x10xf32, #tpu.memory_space<vmem>>, vector<8x10xf32>
    %c0_5 = arith.constant 0 : index
    %c0_6 = arith.constant 0 : index
    %9 = vector.load %arg4[%c0_5, %c0_6] : memref<8x1xi32, #tpu.memory_space<vmem>>, vector<8x1xi32>
    %c10_i32 = arith.constant 10 : i32
    %10 = arith.muli %arg2, %c10_i32 : i32
    %11 = tpu.iota {dimensions = array<i32: 1>} : vector<8x10xi32>
    %12 = vector.broadcast %10 : i32 to vector<8x10xi32>
    %13 = arith.addi %12, %11 : vector<8x10xi32>
    %c0_7 = arith.constant 0 : index
    %c0_8 = arith.constant 0 : index
    %14 = vector.load %arg10[%c0_7, %c0_8] : memref<8x1xf32, #tpu.memory_space<vmem>>, vector<8x1xf32>
    %15 = vector.broadcast %9 : vector<8x1xi32> to vector<8x10xi32>
    %16 = arith.cmpi eq, %13, %15 : vector<8x10xi32>
    %cst = arith.constant 0.000000e+00 : f32
    %17 = vector.broadcast %cst : f32 to vector<8x10xf32>
    %18 = arith.select %16, %8, %17 : vector<8x10xi1>, vector<8x10xf32>
    %cst_9 = arith.constant dense<0.000000e+00> : vector<8xf32>
    %19 = vector.multi_reduction <add>, %18, %cst_9 [1] : vector<8x10xf32> to vector<8xf32>
    %20 = vector.shape_cast %19 : vector<8xf32> to vector<8x1xf32>
    %21 = arith.addf %14, %20 : vector<8x1xf32>
    %c0_10 = arith.constant 0 : index
    %c0_11 = arith.constant 0 : index
    %22 = vector.load %arg10[%c0_10, %c0_11] : memref<8x1xf32, #tpu.memory_space<vmem>>, vector<8x1xf32>
    tpu.vector_store %arg10[%c0_10, %c0_11], %21 {strides = array<i32>} : memref<8x1xf32, #tpu.memory_space<vmem>>, vector<8x1xf32>,
    %c0_12 = arith.constant 0 : index
    %c0_13 = arith.constant 0 : index
    %23 = vector.load %arg8[%c0_12, %c0_13] : memref<8x1xf32, #tpu.memory_space<vmem>>, vector<8x1xf32>
    %cst_14 = arith.constant dense<0xFF800000> : vector<8xf32>
    %24 = vector.multi_reduction <maximumf>, %8, %cst_14 [1] : vector<8x10xf32> to vector<8xf32>
    %25 = vector.shape_cast %24 : vector<8xf32> to vector<8x1xf32>
    %26 = arith.maximumf %23, %25 : vector<8x1xf32>
    %c0_15 = arith.constant 0 : index
    %c0_16 = arith.constant 0 : index
    %27 = vector.load %arg9[%c0_15, %c0_16] : memref<8x1xf32, #tpu.memory_space<vmem>>, vector<8x1xf32>
    %28 = arith.subf %23, %26 : vector<8x1xf32>
    %29 = math.exp %28 : vector<8x1xf32>
    %30 = arith.mulf %27, %29 : vector<8x1xf32>
    %31 = vector.broadcast %26 : vector<8x1xf32> to vector<8x10xf32>
    %32 = arith.subf %8, %31 : vector<8x10xf32>
    %33 = math.exp %32 : vector<8x10xf32>
    %cst_17 = arith.constant dense<0.000000e+00> : vector<8xf32>
    %34 = vector.multi_reduction <add>, %33, %cst_17 [1] : vector<8x10xf32> to vector<8xf32>
    %35 = vector.shape_cast %34 : vector<8xf32> to vector<8x1xf32>
    %36 = arith.addf %30, %35 : vector<8x1xf32>
    %c0_18 = arith.constant 0 : index
    %c0_19 = arith.constant 0 : index
    %37 = vector.load %arg9[%c0_18, %c0_19] : memref<8x1xf32, #tpu.memory_space<vmem>>, vector<8x1xf32>
    tpu.vector_store %arg9[%c0_18, %c0_19], %36 {strides = array<i32>} : memref<8x1xf32, #tpu.memory_space<vmem>>, vector<8x1xf32>,
    %c0_20 = arith.constant 0 : index
    %c0_21 = arith.constant 0 : index
    %38 = vector.load %arg8[%c0_20, %c0_21] : memref<8x1xf32, #tpu.memory_space<vmem>>, vector<8x1xf32>
    tpu.vector_store %arg8[%c0_20, %c0_21], %26 {strides = array<i32>} : memref<8x1xf32, #tpu.memory_space<vmem>>, vector<8x1xf32>,
    %c0_i32_22 = arith.constant 0 : i32
    %39 = arith.cmpi eq, %arg2, %c0_i32_22 : i32
    %40 = arith.extui %39 : i1 to i32
    %c0_i32_23 = arith.constant 0 : i32
    %41 = arith.cmpi ne, %40, %c0_i32_23 : i32
    scf.if %41 {
      %c0_27 = arith.constant 0 : index
      %c0_28 = arith.constant 0 : index
      %47 = vector.load %arg8[%c0_27, %c0_28] : memref<8x1xf32, #tpu.memory_space<vmem>>, vector<8x1xf32>
      %c0_29 = arith.constant 0 : index
      %c0_30 = arith.constant 0 : index
      %48 = vector.load %arg9[%c0_29, %c0_30] : memref<8x1xf32, #tpu.memory_space<vmem>>, vector<8x1xf32>
      %49 = math.log %48 : vector<8x1xf32>
      %50 = arith.addf %47, %49 : vector<8x1xf32>
      %c0_31 = arith.constant 0 : index
      %c0_32 = arith.constant 0 : index
      %51 = vector.load %arg10[%c0_31, %c0_32] : memref<8x1xf32, #tpu.memory_space<vmem>>, vector<8x1xf32>
      %52 = arith.subf %50, %51 : vector<8x1xf32>
      %c0_33 = arith.constant 0 : index
      %c0_34 = arith.constant 0 : index
      %53 = vector.load %arg5[%c0_33, %c0_34] : memref<8x1xf32, #tpu.memory_space<vmem>>, vector<8x1xf32>
      %54 = arith.mulf %52, %53 : vector<8x1xf32>
      %c0_35 = arith.constant 0 : index
      %c0_36 = arith.constant 0 : index
      %55 = vector.load %arg7[%c0_35, %c0_36] : memref<8x1xf32, #tpu.memory_space<vmem>>, vector<8x1xf32>
      %56 = arith.addf %55, %54 : vector<8x1xf32>
      %c0_37 = arith.constant 0 : index
      %c0_38 = arith.constant 0 : index
      %57 = vector.load %arg7[%c0_37, %c0_38] : memref<8x1xf32, #tpu.memory_space<vmem>>, vector<8x1xf32>
      tpu.vector_store %arg7[%c0_37, %c0_38], %56 {strides = array<i32>} : memref<8x1xf32, #tpu.memory_space<vmem>>, vector<8x1xf32>,
    } else {
    }
    %c0_i32_24 = arith.constant 0 : i32
    %42 = arith.cmpi eq, %arg1, %c0_i32_24 : i32
    %c0_i32_25 = arith.constant 0 : i32
    %43 = arith.cmpi eq, %arg2, %c0_i32_25 : i32
    %44 = arith.andi %42, %43 : i1
    %45 = arith.extui %44 : i1 to i32
    %c0_i32_26 = arith.constant 0 : i32
    %46 = arith.cmpi ne, %45, %c0_i32_26 : i32
    scf.if %46 {
      %c0_27 = arith.constant 0 : index
      %c0_28 = arith.constant 0 : index
      %47 = vector.load %arg7[%c0_27, %c0_28] : memref<8x1xf32, #tpu.memory_space<vmem>>, vector<8x1xf32>
      %48 = vector.shape_cast %47 : vector<8x1xf32> to vector<1x8x1xf32>
      %cst_29 = arith.constant dense<0.000000e+00> : vector<1xf32>
      %49 = vector.multi_reduction <add>, %48, %cst_29 [1, 2] : vector<1x8x1xf32> to vector<1xf32>
      %50 = vector.shape_cast %49 : vector<1xf32> to vector<1x1x1xf32>
      %51 = vector.extract %50[0, 0, 0] : f32 from vector<1x1x1xf32>
      %52 = vector.broadcast %51 : f32 to vector<1x1x1xf32>
      %53 = vector.shape_cast %52 : vector<1x1x1xf32> to vector<1x1x1xf32>
      %54 = vector.broadcast %53 : vector<1x1x1xf32> to vector<1x8x128xf32>
      %c0_30 = arith.constant 0 : index
      %c0_31 = arith.constant 0 : index
      %c0_32 = arith.constant 0 : index
      %55 = vector.load %arg6[%c0_30, %c0_31, %c0_32] : memref<1x8x128xf32, #tpu.memory_space<vmem>>, vector<1x8x128xf32>
      tpu.vector_store %arg6[%c0_30, %c0_31, %c0_32], %54 {strides = array<i32>} : memref<1x8x128xf32, #tpu.memory_space<vmem>>, vector<1x8x128xf32>,
    } else {
    }
    return
  }
  func.func @transform_0(%arg0: i32, %arg1: i32, %arg2: i32) -> (i32, i32) {
    %c1_i32 = arith.constant 1 : i32
    %0 = arith.muli %arg0, %c1_i32 : i32
    %1 = arith.addi %0, %arg1 : i32
    %c0_i32 = arith.constant 0 : i32
    return %1, %arg2 : i32, i32
  }
  func.func @transform_1(%arg0: i32, %arg1: i32, %arg2: i32) -> (i32, i32) {
    %c1_i32 = arith.constant 1 : i32
    %0 = arith.muli %arg0, %c1_i32 : i32
    %1 = arith.addi %0, %arg1 : i32
    %c0_i32 = arith.constant 0 : i32
    %c0_i32_0 = arith.constant 0 : i32
    return %1, %c0_i32 : i32, i32
  }
  func.func @transform_2(%arg0: i32, %arg1: i32, %arg2: i32) -> (i32, i32) {
    %c1_i32 = arith.constant 1 : i32
    %0 = arith.muli %arg0, %c1_i32 : i32
    %1 = arith.addi %0, %arg1 : i32
    %c0_i32 = arith.constant 0 : i32
    %c0_i32_0 = arith.constant 0 : i32
    return %1, %c0_i32 : i32, i32
  }
  func.func @transform_3(%arg0: i32, %arg1: i32, %arg2: i32) -> (i32, i32, i32) {
    %c0_i32 = arith.constant 0 : i32
    %c0_i32_0 = arith.constant 0 : i32
    %c0_i32_1 = arith.constant 0 : i32
    return %arg0, %c0_i32, %c0_i32_0 : i32, i32, i32
  }
}

</mosaic_0001>

<llo_original>
// kernel: tpu_custom_call.1
$region0: #{tpu_custom_call.1}
  #allocation0 [shape = 'u32[]', space=smem, size = 0x4, offset = 0x4, fixed_abs, tag = 'smem constant byte address 0x4 - core index']
  #allocation1 [shape = 'u32[144,128]{1,0:T(1,128)}', space=vmem, size = 0x12000, scoped, tag = 'internal scratch']
  #allocation2 [shape = 'f32[8,1]{1,0:T(8,128)}', space=vmem, size = 0x1000, scoped, tag = 'scratch operand']
  #allocation3 [shape = 'f32[8,1]{1,0:T(8,128)}', space=vmem, size = 0x1000, scoped, tag = 'scratch operand']
  #allocation4 [shape = 'f32[8,1]{1,0:T(8,128)}', space=vmem, size = 0x1000, scoped, tag = 'scratch operand']
  #allocation5 [shape = 'f32[8,1]{1,0:T(8,128)}', space=vmem, size = 0x1000, scoped, tag = 'scratch operand']
  %s0 = inlined_call_operand.vmem [shape: f32[8,10], index: 0, kind: input, shape index: {}]
  %s1 = inlined_call_operand.vmem [shape: s32[8,1], index: 1, kind: input, shape index: {}]
  %s2 = inlined_call_operand.vmem [shape: f32[8,1], index: 2, kind: input, shape index: {}]
  %s3 = inlined_call_operand.hbm [shape: f32[1,8,128], index: 3, kind: output, shape index: {}]
  %s4 = sld [smem:[#allocation0]]
  $region38: #{tpu_custom_call.1} parent=0
    _
  %s6 = ssub.s32 1, %s4
  %s7 = scalar_select 0, %s6, %s4
  $region1: #{tpu_custom_call.1} parent=0
    #allocation6 [shape = 'u8[4096]{0}', space=vmem, size = 0x1000, scoped, tag = 'output window, operand 0, single buffered']
    #allocation7 [shape = 's32[1]{0}', space=sflag, size = 0x4, scoped, tag = 'scoped memory for tpu_custom_call.1']
    %8 = vsyncpa [#allocation7], 0
    // Predicated region
    $region2: #{tpu_custom_call.1} parent=1 // pred_check
      _
    $region3: #{tpu_custom_call.1} parent=1 // pred_check_branch
      %10 = sbr.rel (0) target = $region5
    $region4: #{tpu_custom_call.1} parent=1 // pred_region
      %s11 = sadd.s32 0, 0
      %p12 = scmp.lt.s32.totalorder %s11, 0
      %s13 = scalar_select %p12, %s11, 0
      %s14 = smul.addr %s13, 8
      %s15 = scalar_lea.vmem %s0, %s14
      %s16 = sadd.s32 0, 0
    $region5: #{tpu_custom_call.1} parent=1 // pred_fallthru
      _
    // Predicated region
    $region6: #{tpu_custom_call.1} parent=1 // pred_check
      _
    $region7: #{tpu_custom_call.1} parent=1 // pred_check_branch
      %18 = sbr.rel (0) target = $region9
    $region8: #{tpu_custom_call.1} parent=1 // pred_region
      %s19 = sadd.s32 0, 0
      %p20 = scmp.lt.s32.totalorder %s19, 0
      %s21 = scalar_select %p20, %s19, 0
      %s22 = smul.addr %s21, 8
      %s23 = scalar_lea.vmem %s1, %s22
      %s24 = sadd.s32 0, 0
    $region9: #{tpu_custom_call.1} parent=1 // pred_fallthru
      _
    // Predicated region
    $region10: #{tpu_custom_call.1} parent=1 // pred_check
      _
    $region11: #{tpu_custom_call.1} parent=1 // pred_check_branch
      %26 = sbr.rel (0) target = $region13
    $region12: #{tpu_custom_call.1} parent=1 // pred_region
      %s27 = sadd.s32 0, 0
      %p28 = scmp.lt.s32.totalorder %s27, 0
      %s29 = scalar_select %p28, %s27, 0
      %s30 = smul.addr %s29, 8
      %s31 = scalar_lea.vmem %s2, %s30
      %s32 = sadd.s32 0, 0
    $region13: #{tpu_custom_call.1} parent=1 // pred_fallthru
      _
    %s33 = sadd.s32 0, 0
    %p34 = scmp.lt.s32.totalorder %s33, 0
    %s35 = scalar_select %p34, %s33, 0
    %s36 = smul.addr %s35, 8
    %s37 = scalar_lea.vmem %s0, %s36
    %s38 = sadd.s32 0, 0
    %p39 = scmp.lt.s32.totalorder %s38, 0
    %s40 = scalar_select %p39, %s38, 0
    %s41 = smul.addr %s40, 8
    %s42 = scalar_lea.vmem %s1, %s41
    %s43 = sadd.s32 0, 0
    %p44 = scmp.lt.s32.totalorder %s43, 0
    %s45 = scalar_select %p44, %s43, 0
    %s46 = smul.addr %s45, 8
    %s47 = scalar_lea.vmem %s2, %s46
    %s48 = sadd.s32 0, 0
    %p49 = scmp.lt.s32.totalorder %s48, 0
    %s50 = scalar_select %p49, %s48, 0
    %s51 = smul.addr %s50, 8
    %s52 = scalar_lea.vmem %s0, %s51
    %s53 = sadd.s32 0, 0
    %s54 = sadd.s32 0, 0
    %p55 = scmp.lt.s32.totalorder %s54, 0
    %s56 = scalar_select %p55, %s54, 0
    %s57 = smul.addr %s56, 8
    %s58 = scalar_lea.vmem %s1, %s57
    %s59 = sadd.s32 0, 0
    %s60 = sadd.s32 0, 0
    %p61 = scmp.lt.s32.totalorder %s60, 0
    %s62 = scalar_select %p61, %s60, 0
    %s63 = smul.addr %s62, 8
    %s64 = scalar_lea.vmem %s2, %s63
    %s65 = sadd.s32 0, 0
    %p66 = scmp.eq.s32.totalorder 0, 0
    %p67 = scmp.eq.s32.totalorder 0, 0
    %p68 = pnand %p66, %p67
    %p69 = pneg %p68
    // Predicated region
    $region14: #{tpu_custom_call.1} parent=1 // pred_check
      _
    $region15: #{tpu_custom_call.1} parent=1 // pred_check_branch
      %71 = sbr.rel (%p68) target = $region17
    $region16: #{tpu_custom_call.1} parent=1 // pred_region
      %vm72 = vcmask 7168
      %73 = vst.msk [vmem:[#allocation2] sm:$0xff] %vm72, 0.0
    $region17: #{tpu_custom_call.1} parent=1 // pred_fallthru
      _
    // Predicated region
    $region18: #{tpu_custom_call.1} parent=1 // pred_check
      %p74 = pneg %p67
    $region19: #{tpu_custom_call.1} parent=1 // pred_check_branch
      %76 = sbr.rel (%p74) target = $region21
    $region20: #{tpu_custom_call.1} parent=1 // pred_region
      %vm77 = vcmask 7168
      %78 = vst.msk [vmem:[#allocation3] sm:$0xff] %vm77, -inf
      %79 = vst.msk [vmem:[#allocation4] sm:$0xff] %vm77, 0.0
      %80 = vst.msk [vmem:[#allocation5] sm:$0xff] %vm77, 0.0
    $region21: #{tpu_custom_call.1} parent=1 // pred_fallthru
      _
    %v81 = vld [vmem:[%s52] sm:$0xff]
    %v82 = vld [vmem:[%s58] sm:$0xff]
    %s83 = smul.u32 0, 10
    %v84 = vlaneseq
    %v85 = vand.u32 %v84, 127
    %v86 = vstv %s83
    %v87 = vadd.s32 %v86, %v85
    %v88 = vld [vmem:[#allocation5] sm:$0xff]
    %89 = vset.pattern.permute.xlu0 0
    %90 = vperm.xlu0 %89, %v82
    %v91 = vpop.permute.xlu0 %90
    %vm92 = vcmp.eq.s32.totalorder %v87, %v91
    %v93 = vsel %vm92, %v81, 0.0
    %vm94 = vcmask 80896
    %v95 = vsel %vm94, %v93, 0.0
    %96 = vadd.xlane.f32.xlu0 %v95
    %v97 = vpop.xlane.xlu0 %96
    %v98 = vadd.f32 %v88, %v97
    %vm99 = vcmask 7168
    %100 = vst.msk [vmem:[#allocation5] sm:$0xff] %vm99, %v98
    %v101 = vld [vmem:[#allocation3] sm:$0xff]
    %v102 = vsel %vm94, %v81, -inf
    %103 = vmax.xlane.f32.xlu0 %v102
    %v104 = vpop.xlane.xlu0 %103
    %v105 = vmax.f32 %v101, %v104
    %v106 = vld [vmem:[#allocation4] sm:$0xff]
    %v107 = vsub.f32 %v101, %v105
    %v108 = vmul.f32 %v107, 1.442695
    %v109 = vpow.pop %v108
    %v110 = vmul.f32 %v106, %v109
    %112 = vset.pattern.permute.xlu0 0
    %113 = vperm.xlu0 %112, %v105
    %v114 = vpop.permute.xlu0 %113
    %v116 = vsub.f32 %v81, %v114
    %v117 = vmul.f32 %v116, 1.442695
    %v118 = vpow.pop %v117
    %v119 = vsel %vm94, %v118, 0.0
    %120 = vadd.xlane.f32.xlu0 %v119
    %v121 = vpop.xlane.xlu0 %120
    %v122 = vadd.f32 %v110, %v121
    %123 = vst.msk [vmem:[#allocation4] sm:$0xff] %vm99, %v122
    %124 = vst.msk [vmem:[#allocation3] sm:$0xff] %vm99, %v105
    // Predicated region
    $region22: #{tpu_custom_call.1} parent=1 // pred_check
      %p125 = pneg %p67
    $region23: #{tpu_custom_call.1} parent=1 // pred_check_branch
      %127 = sbr.rel (%p125) target = $region25
    $region24: #{tpu_custom_call.1} parent=1 // pred_region
      %v128 = vld [vmem:[#allocation3] sm:$0xff]
      %v129 = vld [vmem:[#allocation4] sm:$0xff]
      %v130 = vlog2.pop %v129
      %v131 = vmul.f32 %v130, 0.6931472
      %v132 = vadd.f32 %v128, %v131
      %v133 = vld [vmem:[#allocation5] sm:$0xff]
      %v134 = vsub.f32 %v132, %v133
      %v135 = vld [vmem:[%s64] sm:$0xff]
      %v136 = vmul.f32 %v134, %v135
      %v137 = vld [vmem:[#allocation2] sm:$0xff]
      %v138 = vadd.f32 %v137, %v136
      %139 = vst.msk [vmem:[#allocation2] sm:$0xff] %vm99, %v138
    $region25: #{tpu_custom_call.1} parent=1 // pred_fallthru
      _
    // Predicated region
    $region26: #{tpu_custom_call.1} parent=1 // pred_check
      _
    $region27: #{tpu_custom_call.1} parent=1 // pred_check_branch
      %141 = sbr.rel (%p68) target = $region29
    $region28: #{tpu_custom_call.1} parent=1 // pred_region
      %v142 = vld [vmem:[#allocation2] sm:$0xff]
      %v143 = vsel %vm99, %v142, 0.0
      %144 = vadd.xlane.f32.xlu0 %v143
      %v145 = vpop.xlane.xlu0 %144
      %v146 = vrot.slane %v145, 4
      %v147 = vadd.f32 %v145, %v146
      %v148 = vrot.slane %v147, 2
      %v149 = vadd.f32 %v147, %v148
      %v150 = vrot.slane %v149, 1
      %v151 = vadd.f32 %v149, %v150
      %s152 = vtos %v151
      %v153 = vstv %s152
      %154 = vst [vmem:[#allocation6] sm:$0xff] %v153
    $region29: #{tpu_custom_call.1} parent=1 // pred_fallthru
      _
    // Predicated region
    $region30: #{tpu_custom_call.1} parent=1 // pred_check
      _
    $region31: #{tpu_custom_call.1} parent=1 // pred_check_branch
      %156 = sbr.rel (0) target = $region33
    $region32: #{tpu_custom_call.1} parent=1 // pred_region
      %s158 = ssub.s32 128, 128
      %159 = vsyncadd [#allocation7], %s158
      %s161 = sshll.u32 [#allocation6], 4
      %s162 = int_to_ptr.vmem [resolvable:$true] %s161
      %164 = dma.vmem_to_hbm [thread:$0]  %s162, 128, %s3, [#allocation7]
    $region33: #{tpu_custom_call.1} parent=1 // pred_fallthru
      _
    // Predicated region
    $region34: #{tpu_custom_call.1} parent=1 // pred_check
      _
    $region35: #{tpu_custom_call.1} parent=1 // pred_check_branch
      %166 = sbr.rel (0) target = $region37
    $region36: #{tpu_custom_call.1} parent=1 // pred_region
      %167 = dma.done [#allocation7], 128
    $region37: #{tpu_custom_call.1} parent=1 // pred_fallthru
      _
    %168 = vsyncpa [#allocation7], 1

</llo_original>
